<compile_context>
chip_gen: v7x
topology: tpu7x:2x2x1
jax: 0.10.0
libtpu: 0.0.40
codegen_flags: <defaults>
</compile_context>

<pallas_src>
import functools

import jax
import jax.numpy as jnp
from jax import lax
from jax.experimental import pallas as pl
from jax.experimental.pallas import tpu as pltpu


def _uce_kernel(x_ref, t_ref, out_ref, *, old_cl, ignore_index, hw, masked,
                num_inner):
    # x_ref:   (C, BP)  logits tile (native dtype; cast to f32 here)
    # t_ref:   (1, BP)  int32 targets tile
    # out_ref: (2, BP)  f32 per-lane partials for this (batch, pixel-chunk):
    #          row 0 = per-lane NLL sum, row 1 = per-lane valid-pixel count.
    j = pl.program_id(2)

    @pl.when(j == 0)
    def _():
        out_ref[...] = jnp.zeros_like(out_ref)

    x = x_ref[...].astype(jnp.float32)                       # (C, BP)
    t = t_ref[...]                                           # (1, BP)
    _, bp = x.shape

    # Shared-exponential logsumexp: one exp pass covers both the full-class
    # denominator and the old-class numerator.
    m_all = jnp.max(x, axis=0, keepdims=True)                # (1, BP)
    e = jnp.exp(x - m_all)                                   # (C, BP)

    chan = lax.broadcasted_iota(jnp.int32, x.shape, 0)       # reused below
    # Old-class sum via a fused channel-mask select: no sublane-unaligned
    # e[:old_cl] slice, so no (old_cl, BP) relayout copy per grid step.
    # TODO(synk): when compute-bound (v7x), both sums could instead be one
    # jnp.dot with a constant selector matrix to offload the adds to the MXU.
    sum_all = jnp.sum(e, axis=0, keepdims=True)
    sum_old = jnp.sum(jnp.where(chan < old_cl, e, 0.0), axis=0, keepdims=True)

    # NOTE: clamping sum_old means fully-underflowed old-class mass yields a
    # finite (~ m_all - 87.3) log-prob instead of -inf; fine for a loss value.
    tiny = jnp.float32(jnp.finfo(jnp.float32).tiny)
    den = m_all + jnp.log(sum_all)
    lse_old = m_all + jnp.log(jnp.maximum(sum_old, tiny))

    # Gather the logit at the target channel (ignore_index >= C never matches;
    # those pixels are masked out below anyway).
    gathered = jnp.sum(jnp.where(chan == t, x, 0.0), axis=0, keepdims=True)

    is_old = t < old_cl                                      # remapped to label 0
    valid = t != ignore_index
    if masked:                                               # ragged last tile
        g = pl.program_id(1) * num_inner + j                 # global pixel tile
        lane = lax.broadcasted_iota(jnp.int32, (1, bp), 1)
        valid = valid & ((g * bp + lane) < hw)

    # outputs[:, 0]       = lse_old - den   (old labels remapped to 0)
    # outputs[:, old_cl:] = x[target] - den (new classes)
    # Mask BEFORE accumulating (OOB lanes of a ragged tile hold garbage).
    logprob = jnp.where(is_old, lse_old - den, gathered - den)   # (1, BP)
    contrib = jnp.where(valid, -logprob, 0.0)

    # One full-block accumulator RMW per step (single vector store, no masked
    # 1-sublane partial stores).
    out_ref[...] += jnp.concatenate(
        [contrib, valid.astype(jnp.float32)], axis=0)


def _vmem_capacity_bytes():
    try:
        info = pltpu.get_tpu_info()
        cap = getattr(info, "vmem_capacity_bytes", None)
        if cap:
            return int(cap)
    except Exception:
        pass
    return 64 * 1024 * 1024        # conservative default (v7x per-TC VMEM)


def _per_step_vmem_bytes(bp, C, itemsize):
    dma = 2 * bp * (C * itemsize + 4)       # double-buffered logits + i32 targets
    temps = 20 * C * bp + 96 * bp           # in-kernel f32/i32 (C, bp) slabs etc.
    return dma + temps


def unbiased_cross_entropy(inputs, targets, *, old_cl, ignore_index=255,
                           reduction="mean", block_pixels=32768):
    """inputs: (N, C, H, W) float logits; targets: (N, H, W) int labels."""
    N, C, H, W = inputs.shape
    HW = H * W

    # Free, contiguous reshapes -- no HBM transpose, no dtype upcast in HBM
    # (bf16 logits stay bf16 on the DMA and are cast to f32 inside the kernel).
    x = inputs.reshape(N, C, HW)
    t = targets.reshape(N, 1, HW)
    if t.dtype != jnp.int32:
        t = t.astype(jnp.int32)

    itemsize = jnp.dtype(x.dtype).itemsize

    # Generation-aware VMEM budget (v7x: 64 MiB physical, v5e/v6e: 128 MiB).
    phys = _vmem_capacity_bytes()
    budget = max(16 * 1024 * 1024,
                 min(phys - 24 * 1024 * 1024, 80 * 1024 * 1024))

    # Lane-dense pixel tile: as large as the budget allows (multiple of 128, or
    # the full row) so per-step pipeline overhead stays negligible.
    bp = min(int(block_pixels), HW)
    if bp < HW:
        bp = max(128, (bp // 128) * 128)
    while bp > 128 and _per_step_vmem_bytes(bp, C, itemsize) > budget:
        nb = max(128, ((bp // 2) // 128) * 128)
        if nb >= bp:
            break
        bp = nb
    bp = min(bp, HW)

    num_j = (HW + bp - 1) // bp
    masked = (HW % bp) != 0          # Python-static: zero cost when bp | HW

    # Extra "parallel" pixel-chunk axis so both v7x TensorCores stay busy when
    # the batch alone can't be split evenly across cores (no effect v5e/v6e).
    if (N % 2 == 1) and (num_j % 2 == 0) and num_j >= 2:
        num_outer = 2
    else:
        num_outer = 1
    num_inner = num_j // num_outer

    need = _per_step_vmem_bytes(bp, C, itemsize)
    vmem_limit = int(min(phys - 8 * 1024 * 1024,
                         max(need + 8 * 1024 * 1024, 32 * 1024 * 1024)))

    kernel = functools.partial(_uce_kernel, old_cl=int(old_cl),
                               ignore_index=int(ignore_index),
                               hw=HW, masked=masked, num_inner=num_inner)

    partials = pl.pallas_call(
        kernel,
        out_shape=jax.ShapeDtypeStruct((N, num_outer, 2, bp), jnp.float32),
        grid_spec=pltpu.PrefetchScalarGridSpec(
            num_scalar_prefetch=0,
            grid=(N, num_outer, num_inner),
            in_specs=[
                pl.BlockSpec((None, C, bp),
                             lambda n, o, j: (n, 0, o * num_inner + j)),
                pl.BlockSpec((None, 1, bp),
                             lambda n, o, j: (n, 0, o * num_inner + j)),
            ],
            out_specs=pl.BlockSpec((None, None, 2, bp),
                                   lambda n, o, j: (n, o, 0, 0)),
        ),
        compiler_params=pltpu.CompilerParams(
            dimension_semantics=("parallel", "parallel", "arbitrary"),
            vmem_limit_bytes=vmem_limit),
    )(x, t)

    loss_sum = jnp.sum(partials[:, :, 0, :])
    count = jnp.sum(partials[:, :, 1, :])

    if reduction == "mean":
        # Matches PyTorch / the reference: an all-ignored batch yields NaN.
        return loss_sum / count
    elif reduction == "sum":
        return loss_sum
    else:
        # TODO(synk): reduction='none' would need a per-pixel output map.
        raise NotImplementedError(f"reduction={reduction!r}")


def _reference(inputs, targets, old_cl, ignore_index=255):
    """Pure-JAX replica of the PyTorch forward for validation."""
    den = jax.scipy.special.logsumexp(inputs, axis=1)                 # (N,H,W)
    lse_old = jax.scipy.special.logsumexp(inputs[:, :old_cl], axis=1)
    outputs = jnp.zeros_like(inputs)
    outputs = outputs.at[:, 0].set(lse_old - den)
    outputs = outputs.at[:, old_cl:].set(inputs[:, old_cl:] - den[:, None])
    labels = jnp.where(targets < old_cl, 0, targets)
    valid = targets != ignore_index
    safe_labels = jnp.where(valid, labels, 0)
    lp = jnp.take_along_axis(outputs, safe_labels[:, None], axis=1)[:, 0]
    return -jnp.sum(jnp.where(valid, lp, 0.0)) / jnp.sum(valid)


if __name__ == "__main__":
    def run_case(key, N, C, H, W, old_cl, dtype=jnp.float32,
                 block_pixels=32768, tol=1e-4):
        k1, k2, k3 = jax.random.split(key, 3)
        x = jax.random.normal(k1, (N, C, H, W), dtype=jnp.float32)
        t = jax.random.randint(k2, (N, H, W), 0, C)
        ign = jax.random.bernoulli(k3, 0.1, (N, H, W))
        t = jnp.where(ign, 255, t).astype(jnp.int32)
        xd = x.astype(dtype)
        loss = unbiased_cross_entropy(xd, t, old_cl=old_cl, ignore_index=255,
                                      block_pixels=block_pixels)
        loss = jax.block_until_ready(loss)
        ref = _reference(xd.astype(jnp.float32), t, old_cl, 255)
        err = abs(float(loss) - float(ref))
        assert err <= tol * max(1.0, abs(float(ref))), \
            (N, C, H, W, old_cl, str(dtype), float(loss), float(ref))

    keys = jax.random.split(jax.random.PRNGKey(0), 3)
    # (a) baseline small shape, one pixel tile per image.
    run_case(keys[0], N=2, C=8, H=16, W=16, old_cl=4)
    # (b) multi-tile pixel axis: ragged last tile + the outer "parallel"
    #     pixel-chunk split (N odd, even tile count) both exercised.
    run_case(keys[1], N=1, C=6, H=12, W=12, old_cl=3, block_pixels=128)
    # (c) bf16 logits stay bf16 over HBM (f32 compute inside the kernel).
    run_case(keys[2], N=2, C=8, H=16, W=16, old_cl=4,
             dtype=jnp.bfloat16, tol=5e-3)

    print("KERNEL_OK")
</pallas_src>

<mosaic_0001>
module attributes {stable_mosaic.version = 11 : i64} {
  func.func @_uce_kernel(%arg0: i32, %arg1: i32, %arg2: i32, %arg3: memref<1x8x256xf32, #tpu.memory_space<vmem>>, %arg4: memref<1x1x256xi32, #tpu.memory_space<vmem>>, %arg5: memref<1x1x2x256xf32, #tpu.memory_space<vmem>>) attributes {dimension_semantics = [#tpu.dimension_semantics<parallel>, #tpu.dimension_semantics<parallel>, #tpu.dimension_semantics<arbitrary>], iteration_bounds = array<i64: 2, 1, 1>, scalar_prefetch = 0 : i64, scratch_operands = 0 : i64, tpu.core_type = #tpu.core_type<tc>, window_params = [{transform_indices = @transform_0, window_bounds = array<i64: 1, 8, 256>}, {transform_indices = @transform_1, window_bounds = array<i64: 1, 1, 256>}, {transform_indices = @transform_2, window_bounds = array<i64: 1, 1, 2, 256>}]} {
    %c0_i32 = arith.constant 0 : i32
    %0 = arith.cmpi eq, %arg2, %c0_i32 : i32
    %1 = arith.extui %0 : i1 to i32
    %c0_i32_0 = arith.constant 0 : i32
    %2 = arith.cmpi ne, %1, %c0_i32_0 : i32
    scf.if %2 {
      %cst_23 = arith.constant 0.000000e+00 : f32
      %53 = vector.broadcast %cst_23 : f32 to vector<2x256xf32>
      %c0_24 = arith.constant 0 : index
      %c0_25 = arith.constant 0 : index
      %c0_26 = arith.constant 0 : index
      %c0_27 = arith.constant 0 : index
      %54 = vector.load %arg5[%c0_24, %c0_25, %c0_26, %c0_27] : memref<1x1x2x256xf32, #tpu.memory_space<vmem>>, vector<1x1x2x256xf32>
      %55 = vector.shape_cast %54 : vector<1x1x2x256xf32> to vector<2x256xf32>
      %56 = vector.shape_cast %53 : vector<2x256xf32> to vector<1x1x2x256xf32>
      tpu.vector_store %arg5[%c0_24, %c0_25, %c0_26, %c0_27], %56 {strides = array<i32>} : memref<1x1x2x256xf32, #tpu.memory_space<vmem>>, vector<1x1x2x256xf32>,
    } else {
    }
    %c0 = arith.constant 0 : index
    %c0_1 = arith.constant 0 : index
    %c0_2 = arith.constant 0 : index
    %3 = vector.load %arg3[%c0, %c0_1, %c0_2] : memref<1x8x256xf32, #tpu.memory_space<vmem>>, vector<1x8x256xf32>
    %4 = vector.shape_cast %3 : vector<1x8x256xf32> to vector<8x256xf32>
    %c0_3 = arith.constant 0 : index
    %c0_4 = arith.constant 0 : index
    %c0_5 = arith.constant 0 : index
    %5 = vector.load %arg4[%c0_3, %c0_4, %c0_5] : memref<1x1x256xi32, #tpu.memory_space<vmem>>, vector<1x1x256xi32>
    %6 = vector.shape_cast %5 : vector<1x1x256xi32> to vector<1x256xi32>
    %cst = arith.constant dense<0xFF800000> : vector<256xf32>
    %7 = vector.multi_reduction <maximumf>, %4, %cst [0] : vector<8x256xf32> to vector<256xf32>
    %8 = vector.shape_cast %7 : vector<256xf32> to vector<1x256xf32>
    %9 = vector.broadcast %8 : vector<1x256xf32> to vector<8x256xf32>
    %10 = arith.subf %4, %9 : vector<8x256xf32>
    %11 = math.exp %10 : vector<8x256xf32>
    %12 = tpu.iota {dimensions = array<i32: 0>} : vector<8x256xi32>
    %cst_6 = arith.constant dense<0.000000e+00> : vector<256xf32>
    %13 = vector.multi_reduction <add>, %11, %cst_6 [0] : vector<8x256xf32> to vector<256xf32>
    %14 = vector.shape_cast %13 : vector<256xf32> to vector<1x256xf32>
    %c4_i32 = arith.constant 4 : i32
    %15 = vector.broadcast %c4_i32 : i32 to vector<8x256xi32>
    %16 = arith.cmpi slt, %12, %15 : vector<8x256xi32>
    %cst_7 = arith.constant 0.000000e+00 : f32
    %17 = vector.broadcast %cst_7 : f32 to vector<8x256xf32>
    %18 = arith.select %16, %11, %17 : vector<8x256xi1>, vector<8x256xf32>
    %cst_8 = arith.constant dense<0.000000e+00> : vector<256xf32>
    %19 = vector.multi_reduction <add>, %18, %cst_8 [0] : vector<8x256xf32> to vector<256xf32>
    %20 = vector.shape_cast %19 : vector<256xf32> to vector<1x256xf32>
    %21 = math.log %14 : vector<1x256xf32>
    %22 = arith.addf %8, %21 : vector<1x256xf32>
    %cst_9 = arith.constant 1.17549435E-38 : f32
    %23 = vector.broadcast %cst_9 : f32 to vector<1x256xf32>
    %24 = arith.maximumf %20, %23 : vector<1x256xf32>
    %25 = math.log %24 : vector<1x256xf32>
    %26 = arith.addf %8, %25 : vector<1x256xf32>
    %27 = vector.broadcast %6 : vector<1x256xi32> to vector<8x256xi32>
    %28 = arith.cmpi eq, %12, %27 : vector<8x256xi32>
    %cst_10 = arith.constant 0.000000e+00 : f32
    %29 = vector.broadcast %cst_10 : f32 to vector<8x256xf32>
    %30 = arith.select %28, %4, %29 : vector<8x256xi1>, vector<8x256xf32>
    %cst_11 = arith.constant dense<0.000000e+00> : vector<256xf32>
    %31 = vector.multi_reduction <add>, %30, %cst_11 [0] : vector<8x256xf32> to vector<256xf32>
    %32 = vector.shape_cast %31 : vector<256xf32> to vector<1x256xf32>
    %c4_i32_12 = arith.constant 4 : i32
    %33 = vector.broadcast %c4_i32_12 : i32 to vector<1x256xi32>
    %34 = arith.cmpi slt, %6, %33 : vector<1x256xi32>
    %c255_i32 = arith.constant 255 : i32
    %35 = vector.broadcast %c255_i32 : i32 to vector<1x256xi32>
    %36 = arith.cmpi ne, %6, %35 : vector<1x256xi32>
    %37 = arith.subf %26, %22 : vector<1x256xf32>
    %38 = arith.subf %32, %22 : vector<1x256xf32>
    %39 = arith.select %34, %37, %38 : vector<1x256xi1>, vector<1x256xf32>
    %cst_13 = arith.constant 0.000000e+00 : f32
    %40 = vector.broadcast %cst_13 : f32 to vector<1x256xf32>
    %41 = arith.subf %40, %39 : vector<1x256xf32>
    %cst_14 = arith.constant 0.000000e+00 : f32
    %42 = vector.broadcast %cst_14 : f32 to vector<1x256xf32>
    %43 = arith.select %36, %41, %42 : vector<1x256xi1>, vector<1x256xf32>
    %c0_15 = arith.constant 0 : index
    %c0_16 = arith.constant 0 : index
    %c0_17 = arith.constant 0 : index
    %c0_18 = arith.constant 0 : index
    %44 = vector.load %arg5[%c0_15, %c0_16, %c0_17, %c0_18] : memref<1x1x2x256xf32, #tpu.memory_space<vmem>>, vector<1x1x2x256xf32>
    %45 = vector.shape_cast %44 : vector<1x1x2x256xf32> to vector<2x256xf32>
    %46 = arith.extui %36 : vector<1x256xi1> to vector<1x256xi32>
    %47 = arith.sitofp %46 : vector<1x256xi32> to vector<1x256xf32>
    %48 = tpu.concatenate %43, %47 in 0 : vector<1x256xf32>, vector<1x256xf32> -> vector<2x256xf32>
    %49 = arith.addf %45, %48 : vector<2x256xf32>
    %c0_19 = arith.constant 0 : index
    %c0_20 = arith.constant 0 : index
    %c0_21 = arith.constant 0 : index
    %c0_22 = arith.constant 0 : index
    %50 = vector.load %arg5[%c0_19, %c0_20, %c0_21, %c0_22] : memref<1x1x2x256xf32, #tpu.memory_space<vmem>>, vector<1x1x2x256xf32>
    %51 = vector.shape_cast %50 : vector<1x1x2x256xf32> to vector<2x256xf32>
    %52 = vector.shape_cast %49 : vector<2x256xf32> to vector<1x1x2x256xf32>
    tpu.vector_store %arg5[%c0_19, %c0_20, %c0_21, %c0_22], %52 {strides = array<i32>} : memref<1x1x2x256xf32, #tpu.memory_space<vmem>>, vector<1x1x2x256xf32>,
    return
  }
  func.func @transform_0(%arg0: i32, %arg1: i32, %arg2: i32) -> (i32, i32, i32) {
    %c1_i32 = arith.constant 1 : i32
    %0 = arith.muli %arg1, %c1_i32 : i32
    %1 = arith.addi %0, %arg2 : i32
    %c0_i32 = arith.constant 0 : i32
    %c0_i32_0 = arith.constant 0 : i32
    return %arg0, %c0_i32, %1 : i32, i32, i32
  }
  func.func @transform_1(%arg0: i32, %arg1: i32, %arg2: i32) -> (i32, i32, i32) {
    %c1_i32 = arith.constant 1 : i32
    %0 = arith.muli %arg1, %c1_i32 : i32
    %1 = arith.addi %0, %arg2 : i32
    %c0_i32 = arith.constant 0 : i32
    %c0_i32_0 = arith.constant 0 : i32
    return %arg0, %c0_i32, %1 : i32, i32, i32
  }
  func.func @transform_2(%arg0: i32, %arg1: i32, %arg2: i32) -> (i32, i32, i32, i32) {
    %c0_i32 = arith.constant 0 : i32
    %c0_i32_0 = arith.constant 0 : i32
    %c0_i32_1 = arith.constant 0 : i32
    return %arg0, %arg1, %c0_i32, %c0_i32_0 : i32, i32, i32, i32
  }
}

</mosaic_0001>

<llo_original>
// kernel: tpu_custom_call.1
$region0: #{tpu_custom_call.1}
  #allocation0 [shape = 'u32[]', space=smem, size = 0x4, offset = 0x4, fixed_abs, tag = 'smem constant byte address 0x4 - core index']
  #allocation1 [shape = 'u32[144,128]{1,0:T(1,128)}', space=vmem, size = 0x12000, scoped, tag = 'internal scratch']
  %s0 = inlined_call_operand.hbm [shape: f32[2,8,256], index: 0, kind: input, shape index: {}]
  %s1 = inlined_call_operand.hbm [shape: s32[2,1,256], index: 1, kind: input, shape index: {}]
  %s2 = inlined_call_operand.hbm [shape: f32[2,1,2,256], index: 2, kind: output, shape index: {}]
  %s3 = sld [smem:[#allocation0]]
  $region53: #{tpu_custom_call.1} parent=0
    _
  %s5 = ssub.s32 1, %s3
  %s6 = scalar_select 0, %s5, %s3
  $region1: #{tpu_custom_call.1} parent=0
    #allocation2 [shape = 'u8[16384]{0}', space=vmem, size = 0x4000, scoped, tag = 'input window, operand 0']
    #allocation3 [shape = 's32[2]{0}', space=sflag, size = 0x8, scoped, tag = 'scoped memory for tpu_custom_call.1']
    #allocation4 [shape = 's32[2]{0}', space=sflag, size = 0x8, scoped, tag = 'scoped memory for tpu_custom_call.1']
    #allocation5 [shape = 'u8[2048]{0}', space=vmem, size = 0x800, scoped, tag = 'input window, operand 1']
    #allocation6 [shape = 's32[2]{0}', space=sflag, size = 0x8, scoped, tag = 'scoped memory for tpu_custom_call.1']
    #allocation7 [shape = 'u8[4096]{0}', space=vmem, size = 0x1000, scoped, tag = 'output window, operand 0']
    %7 = vsyncpa [#allocation3], 0
    %s8 = scalar_lea.sflag [#allocation3], 1
    %9 = vsyncpa %s8, 0
    %10 = vsyncpa [#allocation6], 0
    %s11 = scalar_lea.sflag [#allocation6], 1
    %12 = vsyncpa %s11, 0
    %13 = vsyncpa [#allocation4], 0
    %s14 = scalar_lea.sflag [#allocation4], 1
    %15 = vsyncpa %s14, 0
    loop: start=0, step=1, limit=4
    $region2: #{tpu_custom_call.1} parent=1 // loop_pre_header
      _
    $region3: #{tpu_custom_call.1} parent=1 // loop_header
      %s17 = sphi 0, %s21
      %p18 = scmp.ge.s32.totalorder %s17, 4
      %s24 = sphi 0, %s43
      %s25 = sphi 0, %s39
      %s26 = sphi 0, %s35
      %s27 = sphi 0, %s24
      %s28 = sphi 0, %s25
      %s29 = sphi 0, %s26
      %s30 = sphi 0, %s27
      %s31 = sphi 0, %s28
      %s32 = sphi 0, %s29
      %s50 = sphi 0, %s52
      %s53 = sphi 0, %s50
      %s54 = sphi 0, %s53
      %s70 = sphi 0, %s54
      %s80 = sphi 0, %s82
      %s83 = sphi 0, %s80
      %s84 = sphi 0, %s83
      %s100 = sphi 0, %s84
      %s108 = sphi 0, %s110
      %s111 = sphi 0, %s108
      %s112 = sphi 0, %s111
      %s128 = sphi 0, %s112
    $region4: #{tpu_custom_call.1} parent=1 // loop_header_branch
      %20 = sbr.rel (%p18) target = $region8
    $region5: #{tpu_custom_call.1} parent=1 // loop_body
      %s22 = ssub.s32 %s17, 1
      %s23 = ssub.s32 %s17, 2
      %s33 = sadd.s32 1, %s26
      %p34 = scmp.ge.s32.totalorder %s33, 1
      %s35 = scalar_select %p34, 0, %s33
      %s36 = sadd.s32 1, %s25
      %s37 = scalar_select %p34, %s36, %s25
      %p38 = scmp.ge.s32.totalorder %s37, 1
      %s39 = scalar_select %p38, 0, %s37
      %s40 = sadd.s32 1, %s24
      %s41 = scalar_select %p38, %s40, %s24
      %p42 = scmp.ge.s32.totalorder %s41, 2
      %s43 = scalar_select %p42, 0, %s41
      %s44 = sadd.s32 %s25, %s26
      %s45 = sadd.s32 %s39, %s35
      %s46 = ssub.s32 %s24, %s43
      %s47 = ssub.s32 %s44, %s45
      %s48 = sor.u32 %s46, %s47
      %p49 = scmp.eq.s32.totalorder %s48, 0
      %s51 = sadd.s32 %s50, 1
      %s52 = scalar_select %p49, %s50, %s51
      %p55 = pneg %p49
      %p56 = scmp.eq.s32.totalorder %s17, 1
      %p57 = por %p55, %p56
      %p58 = scmp.ne.s32.totalorder %s50, %s53
      %p59 = scmp.eq.s32.totalorder %s17, 0
      %p60 = por %p58, %p59
      %p61 = scmp.ne.s32.totalorder %s50, %s53
      %p62 = scmp.eq.s32.totalorder %s22, 1
      %p63 = por %p61, %p62
      %p64 = scmp.ne.s32.totalorder %s53, %s54
      %p65 = scmp.eq.s32.totalorder %s22, 0
      %p66 = por %p64, %p65
      %p67 = scmp.ne.s32.totalorder %s53, %s54
      %p68 = scmp.eq.s32.totalorder %s23, 1
      %p69 = por %p67, %p68
      %p71 = scmp.ne.s32.totalorder %s54, %s70
      %p72 = scmp.eq.s32.totalorder %s23, 0
      %p73 = por %p71, %p72
      %s74 = sadd.s32 %s25, %s26
      %s75 = sadd.s32 %s39, %s35
      %s76 = ssub.s32 %s24, %s43
      %s77 = ssub.s32 %s74, %s75
      %s78 = sor.u32 %s76, %s77
      %p79 = scmp.eq.s32.totalorder %s78, 0
      %s81 = sadd.s32 %s80, 1
      %s82 = scalar_select %p79, %s80, %s81
      %p85 = pneg %p79
      %p86 = scmp.eq.s32.totalorder %s17, 1
      %p87 = por %p85, %p86
      %p88 = scmp.ne.s32.totalorder %s80, %s83
      %p89 = scmp.eq.s32.totalorder %s17, 0
      %p90 = por %p88, %p89
      %p91 = scmp.ne.s32.totalorder %s80, %s83
      %p92 = scmp.eq.s32.totalorder %s22, 1
      %p93 = por %p91, %p92
      %p94 = scmp.ne.s32.totalorder %s83, %s84
      %p95 = scmp.eq.s32.totalorder %s22, 0
      %p96 = por %p94, %p95
      %p97 = scmp.ne.s32.totalorder %s83, %s84
      %p98 = scmp.eq.s32.totalorder %s23, 1
      %p99 = por %p97, %p98
      %p101 = scmp.ne.s32.totalorder %s84, %s100
      %p102 = scmp.eq.s32.totalorder %s23, 0
      %p103 = por %p101, %p102
      %s104 = ssub.s32 %s24, %s43
      %s105 = ssub.s32 %s25, %s39
      %s106 = sor.u32 %s104, %s105
      %p107 = scmp.eq.s32.totalorder %s106, 0
      %s109 = sadd.s32 %s108, 1
      %s110 = scalar_select %p107, %s108, %s109
      %p113 = pneg %p107
      %p114 = scmp.eq.s32.totalorder %s17, 1
      %p115 = por %p113, %p114
      %p116 = scmp.ne.s32.totalorder %s108, %s111
      %p117 = scmp.eq.s32.totalorder %s17, 0
      %p118 = por %p116, %p117
      %p119 = scmp.ne.s32.totalorder %s108, %s111
      %p120 = scmp.eq.s32.totalorder %s22, 1
      %p121 = por %p119, %p120
      %p122 = scmp.ne.s32.totalorder %s111, %s112
      %p123 = scmp.eq.s32.totalorder %s22, 0
      %p124 = por %p122, %p123
      %p125 = scmp.ne.s32.totalorder %s111, %s112
      %p126 = scmp.eq.s32.totalorder %s23, 1
      %p127 = por %p125, %p126
      %p129 = scmp.ne.s32.totalorder %s112, %s128
      %p130 = scmp.eq.s32.totalorder %s23, 0
      %p131 = por %p129, %p130
      %p132 = scmp.le.s32.totalorder 1, %s17
      %p133 = scmp.lt.s32.totalorder %s17, 3
      %p134 = pnand %p132, %p133
      %p135 = pneg %p134
      // Predicated region
      $region9: #{tpu_custom_call.1} parent=5 // pred_check
        _
      $region10: #{tpu_custom_call.1} parent=5 // pred_check_branch
        %137 = sbr.rel (%p134) target = $region12
      $region11: #{tpu_custom_call.1} parent=5 // pred_region
        %s138 = ssub.s32 %s17, 1
      $region12: #{tpu_custom_call.1} parent=5 // pred_fallthru
        _
      %p139 = scmp.lt.s32.totalorder %s17, 2
      // Predicated region
      $region13: #{tpu_custom_call.1} parent=5 // pred_check
        %p140 = pneg %p139
      $region14: #{tpu_custom_call.1} parent=5 // pred_check_branch
        %142 = sbr.rel (%p140) target = $region16
      $region15: #{tpu_custom_call.1} parent=5 // pred_region
        // Predicated region
        $region17: #{tpu_custom_call.1} parent=15 // pred_check
          %p143 = pneg %p60
        $region18: #{tpu_custom_call.1} parent=15 // pred_check_branch
          %145 = sbr.rel (%p143) target = $region20
        $region19: #{tpu_custom_call.1} parent=15 // pred_region
          %s146 = sand.u32 %s50, 1
          %s147 = scalar_lea.sflag [#allocation3], %s146
          %s148 = sand.u32 %s50, 1
          %s149 = smul.addr %s148, 16
          %s150 = scalar_lea.vmem [#allocation2], %s149
          %s151 = sadd.s32 %s25, %s26
          %s152 = smul.u32 2, %s151
          %s154 = ssub.s32 256, 256
          %155 = vsyncadd %s147, %s154
          %s156 = smul.addr %s24, 2
          %s157 = sadd.s32 %s152, %s156
          %s158 = smul.addr %s157, 128
          %s159 = scalar_lea.hbm %s0, %s158
          %s161 = sshll.u32 %s150, 4
          %s162 = int_to_ptr.vmem [resolvable:$true] %s161
          %164 = dma.hbm_to_vmem [thread:$0]  %s159, 256, %s162, %s147
        $region20: #{tpu_custom_call.1} parent=15 // pred_fallthru
          _
        // Predicated region
        $region21: #{tpu_custom_call.1} parent=15 // pred_check
          %p165 = pneg %p90
        $region22: #{tpu_custom_call.1} parent=15 // pred_check_branch
          %167 = sbr.rel (%p165) target = $region24
        $region23: #{tpu_custom_call.1} parent=15 // pred_region
          %s168 = sand.u32 %s80, 1
          %s169 = scalar_lea.sflag [#allocation6], %s168
          %s170 = sand.u32 %s80, 1
          %s171 = smul.addr %s170, 2
          %s172 = scalar_lea.vmem [#allocation5], %s171
          %s173 = sadd.s32 %s25, %s26
          %s174 = smul.u32 2, %s173
          %s176 = ssub.s32 32, 32
          %177 = vsyncadd %s169, %s176
          %s178 = smul.addr %s24, 2
          %s179 = sadd.s32 %s174, %s178
          %s180 = smul.addr %s179, 16
          %s181 = scalar_lea.hbm %s1, %s180
          %s183 = sshll.u32 %s172, 4
          %s184 = int_to_ptr.vmem [resolvable:$true] %s183
          %186 = dma.hbm_to_vmem [thread:$0]  %s181, 32, %s184, %s169
        $region24: #{tpu_custom_call.1} parent=15 // pred_fallthru
          _
      $region16: #{tpu_custom_call.1} parent=5 // pred_fallthru
        _
      %p187 = scmp.le.s32.totalorder 1, %s17
      %p188 = scmp.lt.s32.totalorder %s17, 3
      %p189 = pnand %p187, %p188
      %p190 = pneg %p189
      // Predicated region
      $region25: #{tpu_custom_call.1} parent=5 // pred_check
        _
      $region26: #{tpu_custom_call.1} parent=5 // pred_check_branch
        %192 = sbr.rel (%p189) target = $region28
      $region27: #{tpu_custom_call.1} parent=5 // pred_region
        %s193 = ssub.s32 %s17, 1
        %s194 = sand.u32 %s53, 1
        %s195 = scalar_lea.sflag [#allocation3], %s194
        %s196 = sand.u32 %s53, 1
        %s197 = smul.addr %s196, 16
        %s198 = scalar_lea.vmem [#allocation2], %s197
        // Predicated region
        $region29: #{tpu_custom_call.1} parent=27 // pred_check
          %p199 = pneg %p66
        $region30: #{tpu_custom_call.1} parent=27 // pred_check_branch
          %201 = sbr.rel (%p199) target = $region32
        $region31: #{tpu_custom_call.1} parent=27 // pred_region
          %202 = dma.done %s195, 256
        $region32: #{tpu_custom_call.1} parent=27 // pred_fallthru
          _
        %s203 = sand.u32 %s83, 1
        %s204 = scalar_lea.sflag [#allocation6], %s203
        %s205 = sand.u32 %s83, 1
        %s206 = smul.addr %s205, 2
        %s207 = scalar_lea.vmem [#allocation5], %s206
        // Predicated region
        $region33: #{tpu_custom_call.1} parent=27 // pred_check
          %p208 = pneg %p96
        $region34: #{tpu_custom_call.1} parent=27 // pred_check_branch
          %210 = sbr.rel (%p208) target = $region36
        $region35: #{tpu_custom_call.1} parent=27 // pred_region
          %211 = dma.done %s204, 32
        $region36: #{tpu_custom_call.1} parent=27 // pred_fallthru
          _
        %s212 = sand.u32 %s53, 1
        %s213 = scalar_lea.sflag [#allocation3], %s212
        %s214 = sand.u32 %s53, 1
        %s215 = smul.addr %s214, 16
        %s216 = scalar_lea.vmem [#allocation2], %s215
        %p217 = pneg %p66
        %p218 = pneg %p63
        %s219 = sand.u32 %s83, 1
        %s220 = scalar_lea.sflag [#allocation6], %s219
        %s221 = sand.u32 %s83, 1
        %s222 = smul.addr %s221, 2
        %s223 = scalar_lea.vmem [#allocation5], %s222
        %p224 = pneg %p96
        %p225 = pneg %p93
        %p226 = pneg %p124
        %p227 = pneg %p121
        %s228 = sand.u32 %s111, 1
        %s229 = scalar_lea.sflag [#allocation4], %s228
        %s230 = sand.u32 %s111, 1
        %s231 = smul.addr %s230, 4
        %s232 = scalar_lea.vmem [#allocation7], %s231
        %s233 = sadd.s32 %s28, %s29
        %s234 = smul.u32 2, %s233
        %s235 = sadd.s32 %s28, %s29
        %s236 = smul.u32 2, %s235
        %p237 = scmp.eq.s32.totalorder %s29, 0
        // Predicated region
        $region37: #{tpu_custom_call.1} parent=27 // pred_check
          %p238 = pneg %p237
        $region38: #{tpu_custom_call.1} parent=27 // pred_check_branch
          %240 = sbr.rel (%p238) target = $region40
        $region39: #{tpu_custom_call.1} parent=27 // pred_region
          %241 = vst [vmem:[%s232] sm:$0xf] 0.0
        $region40: #{tpu_custom_call.1} parent=27 // pred_fallthru
          _
        %v242 = vld [vmem:[%s198] sm:$0xff]
        %v243 = vld [vmem:[%s198 + $0x8] sm:$0xff]
        %v244 = vld [vmem:[%s207] sm:$0x3]
        %v245 = vrot.slane %v242, 4
        %v246 = vmax.f32 %v242, %v245
        %v247 = vrot.slane %v246, 2
        %v248 = vmax.f32 %v246, %v247
        %v249 = vrot.slane %v248, 1
        %v250 = vmax.f32 %v248, %v249
        %v251 = vrot.slane %v243, 4
        %v252 = vmax.f32 %v243, %v251
        %v253 = vrot.slane %v252, 2
        %v254 = vmax.f32 %v252, %v253
        %v255 = vrot.slane %v254, 1
        %v256 = vmax.f32 %v254, %v255
        %v257 = vsub.f32 %v242, %v250
        %v258 = vsub.f32 %v243, %v256
        %v259 = vmul.f32 %v257, 1.442695
        %v260 = vpow.pop %v259
        %v261 = vmul.f32 %v258, 1.442695
        %v262 = vpow.pop %v261
        %v263 = vlaneseq
        %v264 = vshrl.u32 %v263, 7
        %v265 = vrot.slane %v260, 4
        %v266 = vadd.f32 %v260, %v265
        %v267 = vrot.slane %v266, 2
        %v268 = vadd.f32 %v266, %v267
        %v269 = vrot.slane %v268, 1
        %v270 = vadd.f32 %v268, %v269
        %v271 = vrot.slane %v262, 4
        %v272 = vadd.f32 %v262, %v271
        %v273 = vrot.slane %v272, 2
        %v274 = vadd.f32 %v272, %v273
        %v275 = vrot.slane %v274, 1
        %v276 = vadd.f32 %v274, %v275
        %vm277 = vcmp.lt.s32.totalorder %v264, 4
        %v278 = vsel %vm277, %v260, 0.0
        %v279 = vsel %vm277, %v262, 0.0
        %v280 = vrot.slane %v278, 4
        %v281 = vadd.f32 %v278, %v280
        %v282 = vrot.slane %v281, 2
        %v283 = vadd.f32 %v281, %v282
        %v284 = vrot.slane %v283, 1
        %v285 = vadd.f32 %v283, %v284
        %v286 = vrot.slane %v279, 4
        %v287 = vadd.f32 %v279, %v286
        %v288 = vrot.slane %v287, 2
        %v289 = vadd.f32 %v287, %v288
        %v290 = vrot.slane %v289, 1
        %v291 = vadd.f32 %v289, %v290
        %v292 = vlog2.pop %v270
        %v293 = vmul.f32 %v292, 0.6931472
        %v294 = vlog2.pop %v276
        %v295 = vmul.f32 %v294, 0.6931472
        %v296 = vadd.f32 %v250, %v293
        %v297 = vadd.f32 %v256, %v295
        %v298 = vmax.f32 %v285, 1.1754944e-38
        %v299 = vmax.f32 %v291, 1.1754944e-38
        %v300 = vlog2.pop %v298
        %v301 = vmul.f32 %v300, 0.6931472
        %v302 = vlog2.pop %v299
        %v303 = vmul.f32 %v302, 0.6931472
        %v304 = vadd.f32 %v250, %v301
        %v305 = vadd.f32 %v256, %v303
        %v306 = vlaneseq
        %v307 = vshrl.u32 %v306, 7
        %v308 = vsub.s32 0, %v307
        %v309 = vrot.slane %v244, %v308
        %v310 = vlaneseq
        %v311 = vshrl.u32 %v310, 7
        %v312 = vsub.s32 1, %v311
        %v313 = vrot.slane %v244, %v312
        %vm314 = vcmp.eq.s32.totalorder %v264, %v309
        %vm315 = vcmp.eq.s32.totalorder %v264, %v313
        %v316 = vsel %vm314, %v242, 0.0
        %v317 = vsel %vm315, %v243, 0.0
        %v318 = vrot.slane %v316, 4
        %v319 = vadd.f32 %v316, %v318
        %v320 = vrot.slane %v319, 2
        %v321 = vadd.f32 %v319, %v320
        %v322 = vrot.slane %v321, 1
        %v323 = vadd.f32 %v321, %v322
        %v324 = vrot.slane %v317, 4
        %v325 = vadd.f32 %v317, %v324
        %v326 = vrot.slane %v325, 2
        %v327 = vadd.f32 %v325, %v326
        %v328 = vrot.slane %v327, 1
        %v329 = vadd.f32 %v327, %v328
        %vm330 = vcmp.lt.s32.totalorder %v244, 4
        %vm331 = vcmp.ne.s32.totalorder %v244, 255
        %v332 = vsub.f32 %v304, %v296
        %v333 = vsub.f32 %v305, %v297
        %v334 = vsub.f32 %v323, %v296
        %v335 = vsub.f32 %v329, %v297
        %v338 = vcombine.low %v332, %v333
        %v340 = vunpack.c.l.s4 1966171168
        %v341 = vunpack.c.0.s8 %v340
        %v342 = vlaneseq
        %v343 = vshrl.u32 %v342, 7
        %v344 = vsub.s32 %v341, %v343
        %v345 = vrot.slane %v338, %v344
        %v347 = vunpack.c.l.s4 1966171168
        %v348 = vunpack.c.0.s8 %v347
        %v349 = vlaneseq
        %v350 = vshrl.u32 %v349, 7
        %v351 = vsub.s32 %v348, %v350
        %v352 = vrot.slane %v345, %v351
        %v356 = vcombine.low %v334, %v335
        %v358 = vunpack.c.l.s4 1966171168
        %v359 = vunpack.c.0.s8 %v358
        %v360 = vlaneseq
        %v361 = vshrl.u32 %v360, 7
        %v362 = vsub.s32 %v359, %v361
        %v363 = vrot.slane %v356, %v362
        %v365 = vunpack.c.l.s4 1966171168
        %v366 = vunpack.c.0.s8 %v365
        %v367 = vlaneseq
        %v368 = vshrl.u32 %v367, 7
        %v369 = vsub.s32 %v366, %v368
        %v370 = vrot.slane %v363, %v369
        %v372 = vsel %vm330, %v352, %v370
        %v373 = vsub.f32 0.0, %v372
        %v374 = vsel %vm331, %v373, 0.0
        %v375 = vld [vmem:[%s232] sm:$0xf]
        %v376 = vsel %vm331, 1, 0
        %v377 = vcvt.s32.f32 %v376
        %v379 = vlaneseq
        %v380 = vshrl.u32 %v379, 7
        %v381 = vsub.s32 0, %v380
        %v382 = vrot.slane %v374, %v381
        %v383 = vlaneseq
        %v384 = vshrl.u32 %v383, 7
        %v385 = vsub.s32 1, %v384
        %v386 = vrot.slane %v374, %v385
        %v390 = vlaneseq
        %v391 = vshrl.u32 %v390, 7
        %v392 = vsub.s32 0, %v391
        %v393 = vrot.slane %v377, %v392
        %v394 = vlaneseq
        %v395 = vshrl.u32 %v394, 7
        %v396 = vsub.s32 1, %v395
        %v397 = vrot.slane %v377, %v396
        %vm400 = vcmask 1040384
        %v401 = vsel %vm400, %v382, %v393
        %v402 = vsel %vm400, %v386, %v397
        %v405 = vcombine.low %v401, %v402
        %v407 = vunpack.c.l.s4 1983009808
        %v408 = vunpack.c.0.s8 %v407
        %v409 = vlaneseq
        %v410 = vshrl.u32 %v409, 7
        %v411 = vsub.s32 %v408, %v410
        %v412 = vrot.slane %v405, %v411
        %v414 = vadd.f32 %v375, %v412
        %415 = vst [vmem:[%s232] sm:$0xf] %v414
        %s416 = sand.u32 %s111, 1
        %s417 = scalar_lea.sflag [#allocation4], %s416
        %s418 = sand.u32 %s111, 1
        %s419 = smul.addr %s418, 4
        %s420 = scalar_lea.vmem [#allocation7], %s419
        // Predicated region
        $region41: #{tpu_custom_call.1} parent=27 // pred_check
          %p421 = pneg %p121
        $region42: #{tpu_custom_call.1} parent=27 // pred_check_branch
          %423 = sbr.rel (%p421) target = $region44
        $region43: #{tpu_custom_call.1} parent=27 // pred_region
          %s425 = ssub.s32 64, 64
          %426 = vsyncadd %s417, %s425
          %s427 = smul.addr %s28, 2
          %s428 = smul.addr %s27, 2
          %s429 = sadd.s32 %s427, %s428
          %s430 = smul.addr %s429, 32
          %s431 = scalar_lea.hbm %s2, %s430
          %s433 = sshll.u32 %s420, 4
          %s434 = int_to_ptr.vmem [resolvable:$true] %s433
          %436 = dma.vmem_to_hbm [thread:$0]  %s434, 64, %s431, %s417
        $region44: #{tpu_custom_call.1} parent=27 // pred_fallthru
          _
      $region28: #{tpu_custom_call.1} parent=5 // pred_fallthru
        _
      %p437 = scmp.le.s32.totalorder 2, %s17
      // Predicated region
      $region45: #{tpu_custom_call.1} parent=5 // pred_check
        %p438 = pneg %p437
      $region46: #{tpu_custom_call.1} parent=5 // pred_check_branch
        %440 = sbr.rel (%p438) target = $region48
      $region47: #{tpu_custom_call.1} parent=5 // pred_region
        %s441 = ssub.s32 %s17, 2
        // Predicated region
        $region49: #{tpu_custom_call.1} parent=47 // pred_check
          %p442 = pneg %p127
        $region50: #{tpu_custom_call.1} parent=47 // pred_check_branch
          %444 = sbr.rel (%p442) target = $region52
        $region51: #{tpu_custom_call.1} parent=47 // pred_region
          %s445 = sand.u32 %s112, 1
          %s446 = scalar_lea.sflag [#allocation4], %s445
          %s447 = sand.u32 %s112, 1
          %s448 = smul.addr %s447, 4
          %s449 = scalar_lea.vmem [#allocation7], %s448
          %450 = dma.done %s446, 64
        $region52: #{tpu_custom_call.1} parent=47 // pred_fallthru
          _
      $region48: #{tpu_custom_call.1} parent=5 // pred_fallthru
        _
    $region6: #{tpu_custom_call.1} parent=1 // loop_footer
      %s21 = sadd.s32 1, %s17
    $region7: #{tpu_custom_call.1} parent=1 // loop_footer_branch
      %16 = sbr.rel target = $region3
    $region8: #{tpu_custom_call.1} parent=1 // loop_exit
      _
    %451 = vsyncpa [#allocation3], 1
    %s452 = scalar_lea.sflag [#allocation3], 1
    %453 = vsyncpa %s452, 1
    %454 = vsyncpa [#allocation6], 1
    %s455 = scalar_lea.sflag [#allocation6], 1
    %456 = vsyncpa %s455, 1
    %457 = vsyncpa [#allocation4], 1
    %s458 = scalar_lea.sflag [#allocation4], 1
    %459 = vsyncpa %s458, 1

</llo_original>
